<compile_context>
chip_gen: v7x
topology: tpu7x:2x2x1
jax: 0.10.0
libtpu: 0.0.40
codegen_flags: <defaults>
</compile_context>

<pallas_src>
import math

import jax
import jax.numpy as jnp
from jax.experimental import pallas as pl
from jax.experimental.pallas import tpu as pltpu

_LANE = 128
_NEG_CLAMP = -100.0  # torch.nn.functional.binary_cross_entropy clamps log at -100


# ----------------------------------------------------------------------------
# Chip queries (best-effort, safe fallbacks)
# ----------------------------------------------------------------------------
def _tpu_info():
    try:
        fn = getattr(pltpu, "get_tpu_info", None)
        return fn() if fn is not None else None
    except Exception:
        return None


def _vmem_capacity_bytes():
    info = _tpu_info()
    cap = getattr(info, "vmem_capacity_bytes", None) if info is not None else None
    if isinstance(cap, int) and cap > 0:
        return cap
    return 64 << 20  # conservative: v7x per-TensorCore VMEM


def _num_tensorcores():
    # v5e / v6e: 1 TensorCore per chip; v7x: 2.  Default to 1 (safe everywhere).
    info = _tpu_info()
    if info is not None:
        for name in ("num_cores", "core_count", "num_tensorcores", "tensorcore_count"):
            n = getattr(info, name, None)
            if isinstance(n, int) and 1 <= n <= 8:
                return n
    return 1


def _round_up(x, m):
    return ((x + m - 1) // m) * m


def _to_slab(x, rows, width):
    """Row-major flatten -> lane-dense (rows, width) slab, tail padded with 1.

    The reshape is layout-preserving (free in XLA); a copy only happens when a
    pad is required.  Pad value 1 makes BCE(pred=1, target=1) exactly 0, so the
    kernel needs no mask."""
    flat = x.reshape(-1)
    total = rows * width
    if total != flat.shape[0]:
        flat = jnp.pad(flat, (0, total - flat.shape[0]), constant_values=1)
    return flat.reshape(rows, width)


# ----------------------------------------------------------------------------
# Kernel
# ----------------------------------------------------------------------------
def _ssmvcb_kernel(s_ref, d_ref, c_ref, tp_ref, tt_ref,
                   s_out_ref, d_out_ref, t_out_ref):
    j = pl.program_id(1)

    @pl.when(j == 0)
    def _init():
        s_out_ref[...] = jnp.zeros_like(s_out_ref)
        d_out_ref[...] = jnp.zeros_like(d_out_ref)
        t_out_ref[...] = jnp.zeros_like(t_out_ref)

    # Native-dtype tiles -> f32 on the VPU (no extra HBM pass in the wrapper).
    s_pred = s_ref[...].astype(jnp.float32)       # (TR, W)
    d_pred = d_ref[...].astype(jnp.float32)       # (TR, W)
    c_true = c_ref[...].astype(jnp.float32)       # (TR, W)

    # Shared complement: used by the supervised BCE's log(1-p) and by the
    # adversary BCE's soft (1 - target) weight (hoisted instead of relying on CSE).
    one_m_s = 1.0 - s_pred
    log_s = jnp.maximum(jnp.log(s_pred), _NEG_CLAMP)
    log_1ms = jnp.maximum(jnp.log(one_m_s), _NEG_CLAMP)

    # Supervised concept BCE: pred = s_pred, target = concepts_true.
    s_bce = -(c_true * log_s + (1.0 - c_true) * log_1ms)

    # Adversary BCE: pred = discr_concepts_pred, soft target = s_pred.
    log_d = jnp.maximum(jnp.log(d_pred), _NEG_CLAMP)
    log_1md = jnp.maximum(jnp.log(1.0 - d_pred), _NEG_CLAMP)
    d_bce = -(s_pred * log_d + one_m_s * log_1md)

    # Per-lane partial sums; lane -> concept (= lane % C) is resolved in the
    # wrapper with a free reshape.  Accumulators stay resident in VMEM over j.
    s_out_ref[...] += jnp.sum(s_bce, axis=0, keepdims=True)   # (1, W)
    d_out_ref[...] += jnp.sum(d_bce, axis=0, keepdims=True)   # (1, W)

    # Binary target BCE rides the same grid on its own (smaller) slab tile.
    t_prob = tp_ref[...].astype(jnp.float32)      # (TRt, 128)
    t_true = tt_ref[...].astype(jnp.float32)
    log_tp = jnp.maximum(jnp.log(t_prob), _NEG_CLAMP)
    log_1mtp = jnp.maximum(jnp.log(1.0 - t_prob), _NEG_CLAMP)
    t_bce = -(t_true * log_tp + (1.0 - t_true) * log_1mtp)
    t_out_ref[...] += jnp.sum(t_bce, axis=0, keepdims=True)   # (1, 128)


# ----------------------------------------------------------------------------
# Wrapper
# ----------------------------------------------------------------------------
def ssmvcb_loss(s_concepts_pred, discr_concepts_pred, concepts_true,
                target_pred_probs, target_pred_logits, target_true,
                us_concepts_sample, *, ncores=None):
    """Returns the same 6-tuple as SSMVCBLoss.forward with default ctor args.

    The per-concept losses are returned as one (C,) array instead of a Python
    list of C scalars (avoids C separate slices/syncs)."""
    B, C = concepts_true.shape
    N = B * C

    # Lane width: multiple of 128 (hardware lanes) and of C, so the concept of
    # a flat element is purely `lane % C`, independent of the slab row.
    W = (_LANE * C) // math.gcd(_LANE, C)          # lcm(128, C)

    isz_c = jnp.dtype(s_concepts_pred.dtype).itemsize
    isz_t = (jnp.dtype(target_pred_probs.dtype).itemsize
             + jnp.dtype(target_true.dtype).itemsize)
    vmem_cap = _vmem_capacity_bytes()

    # Byte-budgeted tile: ~0.5-2 MiB per concept input per grid step, scaled
    # down on small-VMEM parts (v7x: 64 MiB physical per TensorCore).
    budget = max(256 * 1024, min(2 << 20, vmem_cap // 48))
    rows_needed = pl.cdiv(N, W)
    TR = max(8, (budget // (W * isz_c)) // 8 * 8)
    TR = min(TR, _round_up(rows_needed, 8))

    if ncores is None:
        ncores = _num_tensorcores()
    tiles_per_core = pl.cdiv(pl.cdiv(rows_needed, TR), ncores)
    total_tiles = ncores * tiles_per_core
    R_pad = total_tiles * TR

    # Target slab (length-B arrays) tiled over the same grid.
    rows_t_needed = pl.cdiv(B, _LANE)
    TRt = 8 * pl.cdiv(rows_t_needed, 8 * total_tiles)
    Rt_pad = total_tiles * TRt

    # Lane-dense slabs in native layout/dtype (no transposes).
    s_slab = _to_slab(s_concepts_pred, R_pad, W)
    d_slab = _to_slab(discr_concepts_pred, R_pad, W)
    c_slab = _to_slab(concepts_true, R_pad, W)
    tp_slab = _to_slab(target_pred_probs, Rt_pad, _LANE)
    tt_slab = _to_slab(target_true, Rt_pad, _LANE)

    row_map = lambda c, j: (c * tiles_per_core + j, 0)
    cb_spec = pl.BlockSpec((TR, W), row_map)
    tb_spec = pl.BlockSpec((TRt, _LANE), row_map)

    out_shape = (
        jax.ShapeDtypeStruct((ncores, 1, W), jnp.float32),      # s lane sums
        jax.ShapeDtypeStruct((ncores, 1, W), jnp.float32),      # discr lane sums
        jax.ShapeDtypeStruct((ncores, 1, _LANE), jnp.float32),  # target lane sums
    )
    out_specs = (
        pl.BlockSpec((None, 1, W), lambda c, j: (c, 0, 0)),
        pl.BlockSpec((None, 1, W), lambda c, j: (c, 0, 0)),
        pl.BlockSpec((None, 1, _LANE), lambda c, j: (c, 0, 0)),
    )

    # Explicit VMEM budget: double-buffered inputs + headroom for f32 temps.
    step_in_bytes = 3 * TR * W * isz_c + TRt * _LANE * isz_t
    vmem_need = 2 * step_in_bytes + 16 * TR * W * 4 + (1 << 20)
    vmem_limit = int(min(max(vmem_need, 16 << 20), (vmem_cap * 3) // 4))

    extra = {}
    if hasattr(pl, "CostEstimate"):
        extra["cost_estimate"] = pl.CostEstimate(
            flops=int(10 * (2 * N + B)),
            transcendentals=int(4 * N + 2 * B),
            bytes_accessed=int(3 * R_pad * W * isz_c + Rt_pad * _LANE * isz_t
                               + ncores * (2 * W + _LANE) * 4),
        )

    s_part, d_part, t_part = pl.pallas_call(
        _ssmvcb_kernel,
        grid=(ncores, tiles_per_core),
        in_specs=[cb_spec, cb_spec, cb_spec, tb_spec, tb_spec],
        out_specs=out_specs,
        out_shape=out_shape,
        compiler_params=pltpu.CompilerParams(
            dimension_semantics=("parallel", "arbitrary"),
            vmem_limit_bytes=vmem_limit),
        **extra,
    )(s_slab, d_slab, c_slab, tp_slab, tt_slab)

    inv_b = jnp.float32(1.0 / B)
    s_lane = jnp.sum(s_part, axis=0)[0]              # (W,)
    d_lane = jnp.sum(d_part, axis=0)[0]              # (W,)
    # lane l holds concept l % C -> free reshape + tiny reduce.
    s_concepts_loss = jnp.sum(s_lane.reshape(W // C, C), axis=0) * inv_b      # (C,)
    discr_per_concept = jnp.sum(d_lane.reshape(W // C, C), axis=0) * inv_b    # (C,)
    target_loss = jnp.sum(t_part) * inv_b

    summed_s_concepts_loss = jnp.sum(s_concepts_loss)
    summed_discr_concepts_loss = jnp.sum(discr_per_concept)
    summed_gen_concepts_loss = -summed_discr_concepts_loss

    # DECORRELATE=False in the reference: cov is all-zeros with zeroed diagonal,
    # so the squared Frobenius norm is identically 0.
    # TODO(synk): torch.cov + fill_diagonal_ path for DECORRELATE=True.
    us_corr_loss = jnp.float32(0.0)

    # TODO(synk): num_classes != 2 cross-entropy path and the optional
    # target_class_weight / target_sample_weight / c_weights weightings are not
    # implemented (None / num_classes=2 under the default constructor).
    del target_pred_logits, us_concepts_sample

    return (target_loss, s_concepts_loss, summed_s_concepts_loss,
            summed_discr_concepts_loss, summed_gen_concepts_loss,
            us_corr_loss)


# ----------------------------------------------------------------------------
# Pure-JAX reference (for verification only)
# ----------------------------------------------------------------------------
def _reference(s_pred, d_pred, c_true, t_prob, t_true):
    def bce(p, t):
        p = p.astype(jnp.float32)
        t = t.astype(jnp.float32)
        return -(t * jnp.maximum(jnp.log(p), -100.0)
                 + (1.0 - t) * jnp.maximum(jnp.log(1.0 - p), -100.0))
    s_l = jnp.mean(bce(s_pred, c_true), axis=0)
    d_l = jnp.mean(bce(d_pred, s_pred), axis=0)
    t_l = jnp.mean(bce(t_prob, t_true))
    return t_l, s_l, jnp.sum(s_l), jnp.sum(d_l), -jnp.sum(d_l)


def _check(outs, refs, atol, rtol):
    target_loss, s_loss, summed_s, summed_d, summed_g, us_corr = outs
    r_t, r_s, r_ss, r_sd, r_sg = refs
    assert bool(jnp.allclose(target_loss, r_t, atol=atol, rtol=rtol))
    assert bool(jnp.allclose(s_loss, r_s, atol=atol, rtol=rtol))
    assert bool(jnp.allclose(summed_s, r_ss, atol=atol, rtol=rtol))
    assert bool(jnp.allclose(summed_d, r_sd, atol=atol, rtol=rtol))
    assert bool(jnp.allclose(summed_g, r_sg, atol=atol, rtol=rtol))
    assert float(us_corr) == 0.0


if __name__ == "__main__":
    key = jax.random.PRNGKey(0)

    # --- Small demo (shapes implied by the module: batch, concepts, classes) ---
    B, C, NUM_CLASSES, D = 8, 4, 2, 8
    k1, k2, k3, k4, k5, k6, k7 = jax.random.split(key, 7)
    s_concepts_pred = jax.nn.sigmoid(jax.random.normal(k1, (B, C), jnp.float32))
    discr_concepts_pred = jax.nn.sigmoid(jax.random.normal(k2, (B, C), jnp.float32))
    concepts_true = (jax.random.uniform(k3, (B, C)) > 0.5).astype(jnp.float32)
    target_pred_probs = jax.nn.sigmoid(jax.random.normal(k4, (B,), jnp.float32))
    target_pred_logits = jax.random.normal(k5, (B, NUM_CLASSES), jnp.float32)
    target_true = (jax.random.uniform(k6, (B,)) > 0.5).astype(jnp.float32)
    us_concepts_sample = jax.random.normal(k7, (B, D), jnp.float32)

    outs = ssmvcb_loss(s_concepts_pred, discr_concepts_pred, concepts_true,
                       target_pred_probs, target_pred_logits, target_true,
                       us_concepts_sample)
    jax.block_until_ready(outs[0])
    jax.block_until_ready(outs[1])
    refs = _reference(s_concepts_pred, discr_concepts_pred, concepts_true,
                      target_pred_probs, target_true)
    _check(outs, refs, atol=1e-4, rtol=1e-4)

    # --- Larger ragged check: multi-tile grid, C not dividing 128, padding,
    #     and the (sequential-on-1-TC) 2-"core" accumulation path. ---
    B2, C2 = 200_000, 5
    j1, j2, j3, j4, j5 = jax.random.split(jax.random.PRNGKey(1), 5)
    s2 = jax.nn.sigmoid(jax.random.normal(j1, (B2, C2), jnp.float32))
    d2 = jax.nn.sigmoid(jax.random.normal(j2, (B2, C2), jnp.float32))
    c2 = (jax.random.uniform(j3, (B2, C2)) > 0.5).astype(jnp.float32)
    tp2 = jax.nn.sigmoid(jax.random.normal(j4, (B2,), jnp.float32))
    tt2 = (jax.random.uniform(j5, (B2,)) > 0.5).astype(jnp.float32)
    logits2 = jnp.zeros((B2, NUM_CLASSES), jnp.float32)
    us2 = jnp.zeros((B2, D), jnp.float32)

    outs2 = ssmvcb_loss(s2, d2, c2, tp2, logits2, tt2, us2, ncores=2)
    jax.block_until_ready(outs2[0])
    refs2 = _reference(s2, d2, c2, tp2, tt2)
    _check(outs2, refs2, atol=1e-3, rtol=1e-3)

    print("KERNEL_OK")
</pallas_src>

<mosaic_0001>
module attributes {stable_mosaic.version = 11 : i64} {
  func.func @_ssmvcb_kernel(%arg0: i32, %arg1: i32, %arg2: memref<8x128xf32, #tpu.memory_space<vmem>>, %arg3: memref<8x128xf32, #tpu.memory_space<vmem>>, %arg4: memref<8x128xf32, #tpu.memory_space<vmem>>, %arg5: memref<8x128xf32, #tpu.memory_space<vmem>>, %arg6: memref<8x128xf32, #tpu.memory_space<vmem>>, %arg7: memref<1x1x128xf32, #tpu.memory_space<vmem>>, %arg8: memref<1x1x128xf32, #tpu.memory_space<vmem>>, %arg9: memref<1x1x128xf32, #tpu.memory_space<vmem>>) attributes {dimension_semantics = [#tpu.dimension_semantics<parallel>, #tpu.dimension_semantics<arbitrary>], iteration_bounds = array<i64: 1, 1>, scalar_prefetch = 0 : i64, scratch_operands = 0 : i64, tpu.core_type = #tpu.core_type<tc>, window_params = [{transform_indices = @transform_0, window_bounds = array<i64: 8, 128>}, {transform_indices = @transform_1, window_bounds = array<i64: 8, 128>}, {transform_indices = @transform_2, window_bounds = array<i64: 8, 128>}, {transform_indices = @transform_3, window_bounds = array<i64: 8, 128>}, {transform_indices = @transform_4, window_bounds = array<i64: 8, 128>}, {transform_indices = @transform_5, window_bounds = array<i64: 1, 1, 128>}, {transform_indices = @transform_6, window_bounds = array<i64: 1, 1, 128>}, {transform_indices = @transform_7, window_bounds = array<i64: 1, 1, 128>}]} {
    %c0_i32 = arith.constant 0 : i32
    %0 = arith.cmpi eq, %arg1, %c0_i32 : i32
    %1 = arith.extui %0 : i1 to i32
    %c0_i32_0 = arith.constant 0 : i32
    %2 = arith.cmpi ne, %1, %c0_i32_0 : i32
    scf.if %2 {
      %cst_44 = arith.constant 0.000000e+00 : f32
      %75 = vector.broadcast %cst_44 : f32 to vector<1x128xf32>
      %c0_45 = arith.constant 0 : index
      %c0_46 = arith.constant 0 : index
      %c0_47 = arith.constant 0 : index
      %76 = vector.load %arg7[%c0_45, %c0_46, %c0_47] : memref<1x1x128xf32, #tpu.memory_space<vmem>>, vector<1x1x128xf32>
      %77 = vector.shape_cast %76 : vector<1x1x128xf32> to vector<1x128xf32>
      %78 = vector.shape_cast %75 : vector<1x128xf32> to vector<1x1x128xf32>
      tpu.vector_store %arg7[%c0_45, %c0_46, %c0_47], %78 {strides = array<i32>} : memref<1x1x128xf32, #tpu.memory_space<vmem>>, vector<1x1x128xf32>,
      %cst_48 = arith.constant 0.000000e+00 : f32
      %79 = vector.broadcast %cst_48 : f32 to vector<1x128xf32>
      %c0_49 = arith.constant 0 : index
      %c0_50 = arith.constant 0 : index
      %c0_51 = arith.constant 0 : index
      %80 = vector.load %arg8[%c0_49, %c0_50, %c0_51] : memref<1x1x128xf32, #tpu.memory_space<vmem>>, vector<1x1x128xf32>
      %81 = vector.shape_cast %80 : vector<1x1x128xf32> to vector<1x128xf32>
      %82 = vector.shape_cast %79 : vector<1x128xf32> to vector<1x1x128xf32>
      tpu.vector_store %arg8[%c0_49, %c0_50, %c0_51], %82 {strides = array<i32>} : memref<1x1x128xf32, #tpu.memory_space<vmem>>, vector<1x1x128xf32>,
      %cst_52 = arith.constant 0.000000e+00 : f32
      %83 = vector.broadcast %cst_52 : f32 to vector<1x128xf32>
      %c0_53 = arith.constant 0 : index
      %c0_54 = arith.constant 0 : index
      %c0_55 = arith.constant 0 : index
      %84 = vector.load %arg9[%c0_53, %c0_54, %c0_55] : memref<1x1x128xf32, #tpu.memory_space<vmem>>, vector<1x1x128xf32>
      %85 = vector.shape_cast %84 : vector<1x1x128xf32> to vector<1x128xf32>
      %86 = vector.shape_cast %83 : vector<1x128xf32> to vector<1x1x128xf32>
      tpu.vector_store %arg9[%c0_53, %c0_54, %c0_55], %86 {strides = array<i32>} : memref<1x1x128xf32, #tpu.memory_space<vmem>>, vector<1x1x128xf32>,
    } else {
    }
    %c0 = arith.constant 0 : index
    %c0_1 = arith.constant 0 : index
    %3 = vector.load %arg2[%c0, %c0_1] : memref<8x128xf32, #tpu.memory_space<vmem>>, vector<8x128xf32>
    %c0_2 = arith.constant 0 : index
    %c0_3 = arith.constant 0 : index
    %4 = vector.load %arg3[%c0_2, %c0_3] : memref<8x128xf32, #tpu.memory_space<vmem>>, vector<8x128xf32>
    %c0_4 = arith.constant 0 : index
    %c0_5 = arith.constant 0 : index
    %5 = vector.load %arg4[%c0_4, %c0_5] : memref<8x128xf32, #tpu.memory_space<vmem>>, vector<8x128xf32>
    %cst = arith.constant 1.000000e+00 : f32
    %6 = vector.broadcast %cst : f32 to vector<8x128xf32>
    %7 = arith.subf %6, %3 : vector<8x128xf32>
    %8 = math.log %3 : vector<8x128xf32>
    %cst_6 = arith.constant -1.000000e+02 : f32
    %9 = vector.broadcast %cst_6 : f32 to vector<8x128xf32>
    %10 = arith.maximumf %8, %9 : vector<8x128xf32>
    %11 = math.log %7 : vector<8x128xf32>
    %cst_7 = arith.constant -1.000000e+02 : f32
    %12 = vector.broadcast %cst_7 : f32 to vector<8x128xf32>
    %13 = arith.maximumf %11, %12 : vector<8x128xf32>
    %14 = arith.mulf %5, %10 : vector<8x128xf32>
    %cst_8 = arith.constant 1.000000e+00 : f32
    %15 = vector.broadcast %cst_8 : f32 to vector<8x128xf32>
    %16 = arith.subf %15, %5 : vector<8x128xf32>
    %17 = arith.mulf %16, %13 : vector<8x128xf32>
    %18 = arith.addf %14, %17 : vector<8x128xf32>
    %cst_9 = arith.constant 0.000000e+00 : f32
    %19 = vector.broadcast %cst_9 : f32 to vector<8x128xf32>
    %20 = arith.subf %19, %18 : vector<8x128xf32>
    %21 = math.log %4 : vector<8x128xf32>
    %cst_10 = arith.constant -1.000000e+02 : f32
    %22 = vector.broadcast %cst_10 : f32 to vector<8x128xf32>
    %23 = arith.maximumf %21, %22 : vector<8x128xf32>
    %cst_11 = arith.constant 1.000000e+00 : f32
    %24 = vector.broadcast %cst_11 : f32 to vector<8x128xf32>
    %25 = arith.subf %24, %4 : vector<8x128xf32>
    %26 = math.log %25 : vector<8x128xf32>
    %cst_12 = arith.constant -1.000000e+02 : f32
    %27 = vector.broadcast %cst_12 : f32 to vector<8x128xf32>
    %28 = arith.maximumf %26, %27 : vector<8x128xf32>
    %29 = arith.mulf %3, %23 : vector<8x128xf32>
    %30 = arith.mulf %7, %28 : vector<8x128xf32>
    %31 = arith.addf %29, %30 : vector<8x128xf32>
    %cst_13 = arith.constant 0.000000e+00 : f32
    %32 = vector.broadcast %cst_13 : f32 to vector<8x128xf32>
    %33 = arith.subf %32, %31 : vector<8x128xf32>
    %c0_14 = arith.constant 0 : index
    %c0_15 = arith.constant 0 : index
    %c0_16 = arith.constant 0 : index
    %34 = vector.load %arg7[%c0_14, %c0_15, %c0_16] : memref<1x1x128xf32, #tpu.memory_space<vmem>>, vector<1x1x128xf32>
    %35 = vector.shape_cast %34 : vector<1x1x128xf32> to vector<1x128xf32>
    %cst_17 = arith.constant dense<0.000000e+00> : vector<128xf32>
    %36 = vector.multi_reduction <add>, %20, %cst_17 [0] : vector<8x128xf32> to vector<128xf32>
    %37 = vector.shape_cast %36 : vector<128xf32> to vector<1x128xf32>
    %38 = arith.addf %35, %37 : vector<1x128xf32>
    %c0_18 = arith.constant 0 : index
    %c0_19 = arith.constant 0 : index
    %c0_20 = arith.constant 0 : index
    %39 = vector.load %arg7[%c0_18, %c0_19, %c0_20] : memref<1x1x128xf32, #tpu.memory_space<vmem>>, vector<1x1x128xf32>
    %40 = vector.shape_cast %39 : vector<1x1x128xf32> to vector<1x128xf32>
    %41 = vector.shape_cast %38 : vector<1x128xf32> to vector<1x1x128xf32>
    tpu.vector_store %arg7[%c0_18, %c0_19, %c0_20], %41 {strides = array<i32>} : memref<1x1x128xf32, #tpu.memory_space<vmem>>, vector<1x1x128xf32>,
    %c0_21 = arith.constant 0 : index
    %c0_22 = arith.constant 0 : index
    %c0_23 = arith.constant 0 : index
    %42 = vector.load %arg8[%c0_21, %c0_22, %c0_23] : memref<1x1x128xf32, #tpu.memory_space<vmem>>, vector<1x1x128xf32>
    %43 = vector.shape_cast %42 : vector<1x1x128xf32> to vector<1x128xf32>
    %cst_24 = arith.constant dense<0.000000e+00> : vector<128xf32>
    %44 = vector.multi_reduction <add>, %33, %cst_24 [0] : vector<8x128xf32> to vector<128xf32>
    %45 = vector.shape_cast %44 : vector<128xf32> to vector<1x128xf32>
    %46 = arith.addf %43, %45 : vector<1x128xf32>
    %c0_25 = arith.constant 0 : index
    %c0_26 = arith.constant 0 : index
    %c0_27 = arith.constant 0 : index
    %47 = vector.load %arg8[%c0_25, %c0_26, %c0_27] : memref<1x1x128xf32, #tpu.memory_space<vmem>>, vector<1x1x128xf32>
    %48 = vector.shape_cast %47 : vector<1x1x128xf32> to vector<1x128xf32>
    %49 = vector.shape_cast %46 : vector<1x128xf32> to vector<1x1x128xf32>
    tpu.vector_store %arg8[%c0_25, %c0_26, %c0_27], %49 {strides = array<i32>} : memref<1x1x128xf32, #tpu.memory_space<vmem>>, vector<1x1x128xf32>,
    %c0_28 = arith.constant 0 : index
    %c0_29 = arith.constant 0 : index
    %50 = vector.load %arg5[%c0_28, %c0_29] : memref<8x128xf32, #tpu.memory_space<vmem>>, vector<8x128xf32>
    %c0_30 = arith.constant 0 : index
    %c0_31 = arith.constant 0 : index
    %51 = vector.load %arg6[%c0_30, %c0_31] : memref<8x128xf32, #tpu.memory_space<vmem>>, vector<8x128xf32>
    %52 = math.log %50 : vector<8x128xf32>
    %cst_32 = arith.constant -1.000000e+02 : f32
    %53 = vector.broadcast %cst_32 : f32 to vector<8x128xf32>
    %54 = arith.maximumf %52, %53 : vector<8x128xf32>
    %cst_33 = arith.constant 1.000000e+00 : f32
    %55 = vector.broadcast %cst_33 : f32 to vector<8x128xf32>
    %56 = arith.subf %55, %50 : vector<8x128xf32>
    %57 = math.log %56 : vector<8x128xf32>
    %cst_34 = arith.constant -1.000000e+02 : f32
    %58 = vector.broadcast %cst_34 : f32 to vector<8x128xf32>
    %59 = arith.maximumf %57, %58 : vector<8x128xf32>
    %60 = arith.mulf %51, %54 : vector<8x128xf32>
    %cst_35 = arith.constant 1.000000e+00 : f32
    %61 = vector.broadcast %cst_35 : f32 to vector<8x128xf32>
    %62 = arith.subf %61, %51 : vector<8x128xf32>
    %63 = arith.mulf %62, %59 : vector<8x128xf32>
    %64 = arith.addf %60, %63 : vector<8x128xf32>
    %cst_36 = arith.constant 0.000000e+00 : f32
    %65 = vector.broadcast %cst_36 : f32 to vector<8x128xf32>
    %66 = arith.subf %65, %64 : vector<8x128xf32>
    %c0_37 = arith.constant 0 : index
    %c0_38 = arith.constant 0 : index
    %c0_39 = arith.constant 0 : index
    %67 = vector.load %arg9[%c0_37, %c0_38, %c0_39] : memref<1x1x128xf32, #tpu.memory_space<vmem>>, vector<1x1x128xf32>
    %68 = vector.shape_cast %67 : vector<1x1x128xf32> to vector<1x128xf32>
    %cst_40 = arith.constant dense<0.000000e+00> : vector<128xf32>
    %69 = vector.multi_reduction <add>, %66, %cst_40 [0] : vector<8x128xf32> to vector<128xf32>
    %70 = vector.shape_cast %69 : vector<128xf32> to vector<1x128xf32>
    %71 = arith.addf %68, %70 : vector<1x128xf32>
    %c0_41 = arith.constant 0 : index
    %c0_42 = arith.constant 0 : index
    %c0_43 = arith.constant 0 : index
    %72 = vector.load %arg9[%c0_41, %c0_42, %c0_43] : memref<1x1x128xf32, #tpu.memory_space<vmem>>, vector<1x1x128xf32>
    %73 = vector.shape_cast %72 : vector<1x1x128xf32> to vector<1x128xf32>
    %74 = vector.shape_cast %71 : vector<1x128xf32> to vector<1x1x128xf32>
    tpu.vector_store %arg9[%c0_41, %c0_42, %c0_43], %74 {strides = array<i32>} : memref<1x1x128xf32, #tpu.memory_space<vmem>>, vector<1x1x128xf32>,
    return
  }
  func.func @transform_0(%arg0: i32, %arg1: i32) -> (i32, i32) {
    %c1_i32 = arith.constant 1 : i32
    %0 = arith.muli %arg0, %c1_i32 : i32
    %1 = arith.addi %0, %arg1 : i32
    %c0_i32 = arith.constant 0 : i32
    %c0_i32_0 = arith.constant 0 : i32
    return %1, %c0_i32 : i32, i32
  }
  func.func @transform_1(%arg0: i32, %arg1: i32) -> (i32, i32) {
    %c1_i32 = arith.constant 1 : i32
    %0 = arith.muli %arg0, %c1_i32 : i32
    %1 = arith.addi %0, %arg1 : i32
    %c0_i32 = arith.constant 0 : i32
    %c0_i32_0 = arith.constant 0 : i32
    return %1, %c0_i32 : i32, i32
  }
  func.func @transform_2(%arg0: i32, %arg1: i32) -> (i32, i32) {
    %c1_i32 = arith.constant 1 : i32
    %0 = arith.muli %arg0, %c1_i32 : i32
    %1 = arith.addi %0, %arg1 : i32
    %c0_i32 = arith.constant 0 : i32
    %c0_i32_0 = arith.constant 0 : i32
    return %1, %c0_i32 : i32, i32
  }
  func.func @transform_3(%arg0: i32, %arg1: i32) -> (i32, i32) {
    %c1_i32 = arith.constant 1 : i32
    %0 = arith.muli %arg0, %c1_i32 : i32
    %1 = arith.addi %0, %arg1 : i32
    %c0_i32 = arith.constant 0 : i32
    %c0_i32_0 = arith.constant 0 : i32
    return %1, %c0_i32 : i32, i32
  }
  func.func @transform_4(%arg0: i32, %arg1: i32) -> (i32, i32) {
    %c1_i32 = arith.constant 1 : i32
    %0 = arith.muli %arg0, %c1_i32 : i32
    %1 = arith.addi %0, %arg1 : i32
    %c0_i32 = arith.constant 0 : i32
    %c0_i32_0 = arith.constant 0 : i32
    return %1, %c0_i32 : i32, i32
  }
  func.func @transform_5(%arg0: i32, %arg1: i32) -> (i32, i32, i32) {
    %c0_i32 = arith.constant 0 : i32
    %c0_i32_0 = arith.constant 0 : i32
    %c0_i32_1 = arith.constant 0 : i32
    return %arg0, %c0_i32, %c0_i32_0 : i32, i32, i32
  }
  func.func @transform_6(%arg0: i32, %arg1: i32) -> (i32, i32, i32) {
    %c0_i32 = arith.constant 0 : i32
    %c0_i32_0 = arith.constant 0 : i32
    %c0_i32_1 = arith.constant 0 : i32
    return %arg0, %c0_i32, %c0_i32_0 : i32, i32, i32
  }
  func.func @transform_7(%arg0: i32, %arg1: i32) -> (i32, i32, i32) {
    %c0_i32 = arith.constant 0 : i32
    %c0_i32_0 = arith.constant 0 : i32
    %c0_i32_1 = arith.constant 0 : i32
    return %arg0, %c0_i32, %c0_i32_0 : i32, i32, i32
  }
}

</mosaic_0001>

<llo_original>
// kernel: tpu_custom_call.1
$region0: #{tpu_custom_call.1}
  #allocation0 [shape = 'u32[]', space=smem, size = 0x4, offset = 0x4, fixed_abs, tag = 'smem constant byte address 0x4 - core index']
  #allocation1 [shape = 'u32[144,128]{1,0:T(1,128)}', space=vmem, size = 0x12000, scoped, tag = 'internal scratch']
  %s0 = inlined_call_operand.hbm [shape: f32[8,128], index: 0, kind: input, shape index: {}]
  %s1 = inlined_call_operand.hbm [shape: f32[8,128], index: 1, kind: input, shape index: {}]
  %s2 = inlined_call_operand.hbm [shape: f32[8,128], index: 2, kind: input, shape index: {}]
  %s3 = inlined_call_operand.vmem [shape: f32[8,128], index: 3, kind: input, shape index: {}]
  %s4 = inlined_call_operand.hbm [shape: f32[8,128], index: 4, kind: input, shape index: {}]
  %s5 = inlined_call_operand.hbm [shape: f32[1,1,128], index: 5, kind: output, shape index: {0}]
  %s6 = inlined_call_operand.hbm [shape: f32[1,1,128], index: 6, kind: output, shape index: {1}]
  %s7 = inlined_call_operand.hbm [shape: f32[1,1,128], index: 7, kind: output, shape index: {2}]
  %8 = xla_tuple %s5, %s6, %s7
  %s9 = sld [smem:[#allocation0]]
  $region66: #{tpu_custom_call.1} parent=0
    _
  %s11 = ssub.s32 1, %s9
  %s12 = scalar_select 0, %s11, %s9
  $region1: #{tpu_custom_call.1} parent=0
    #allocation2 [shape = 'u8[4096]{0}', space=vmem, size = 0x1000, scoped, tag = 'input window, operand 0, single buffered']
    #allocation3 [shape = 's32[1]{0}', space=sflag, size = 0x4, scoped, tag = 'scoped memory for tpu_custom_call.1']
    #allocation4 [shape = 's32[1]{0}', space=sflag, size = 0x4, scoped, tag = 'scoped memory for tpu_custom_call.1']
    #allocation5 [shape = 'u8[4096]{0}', space=vmem, size = 0x1000, scoped, tag = 'input window, operand 1, single buffered']
    #allocation6 [shape = 's32[1]{0}', space=sflag, size = 0x4, scoped, tag = 'scoped memory for tpu_custom_call.1']
    #allocation7 [shape = 'u8[4096]{0}', space=vmem, size = 0x1000, scoped, tag = 'input window, operand 2, single buffered']
    #allocation8 [shape = 'u8[4096]{0}', space=vmem, size = 0x1000, scoped, tag = 'input window, operand 4, single buffered']
    #allocation9 [shape = 's32[1]{0}', space=sflag, size = 0x4, scoped, tag = 'scoped memory for tpu_custom_call.1']
    #allocation10 [shape = 'u8[512]{0}', space=vmem, size = 0x400, scoped, tag = 'output window, operand 0, single buffered']
    #allocation11 [shape = 'u8[512]{0}', space=vmem, size = 0x400, scoped, tag = 'output window, operand 1, single buffered']
    #allocation12 [shape = 's32[1]{0}', space=sflag, size = 0x4, scoped, tag = 'scoped memory for tpu_custom_call.1']
    #allocation13 [shape = 'u8[512]{0}', space=vmem, size = 0x400, scoped, tag = 'output window, operand 2, single buffered']
    %13 = vsyncpa [#allocation3], 0
    %14 = vsyncpa [#allocation6], 0
    %15 = vsyncpa [#allocation9], 0
    %16 = vsyncpa [#allocation4], 0
    %17 = vsyncpa [#allocation12], 0
    // Predicated region
    $region2: #{tpu_custom_call.1} parent=1 // pred_check
      _
    $region3: #{tpu_custom_call.1} parent=1 // pred_check_branch
      %19 = sbr.rel (0) target = $region5
    $region4: #{tpu_custom_call.1} parent=1 // pred_region
      %s20 = sadd.s32 0, 0
      %s22 = ssub.s32 128, 128
      %23 = vsyncadd [#allocation3], %s22
      %s24 = smul.addr %s20, 128
      %s25 = scalar_lea.hbm %s0, %s24
      %s27 = sshll.u32 [#allocation2], 4
      %s28 = int_to_ptr.vmem [resolvable:$true] %s27
      %30 = dma.hbm_to_vmem [thread:$0]  %s25, 128, %s28, [#allocation3]
    $region5: #{tpu_custom_call.1} parent=1 // pred_fallthru
      _
    // Predicated region
    $region6: #{tpu_custom_call.1} parent=1 // pred_check
      _
    $region7: #{tpu_custom_call.1} parent=1 // pred_check_branch
      %32 = sbr.rel (0) target = $region9
    $region8: #{tpu_custom_call.1} parent=1 // pred_region
      %s33 = sadd.s32 0, 0
      %s35 = ssub.s32 128, 128
      %36 = vsyncadd [#allocation6], %s35
      %s37 = smul.addr %s33, 128
      %s38 = scalar_lea.hbm %s1, %s37
      %s40 = sshll.u32 [#allocation5], 4
      %s41 = int_to_ptr.vmem [resolvable:$true] %s40
      %43 = dma.hbm_to_vmem [thread:$0]  %s38, 128, %s41, [#allocation6]
    $region9: #{tpu_custom_call.1} parent=1 // pred_fallthru
      _
    // Predicated region
    $region10: #{tpu_custom_call.1} parent=1 // pred_check
      _
    $region11: #{tpu_custom_call.1} parent=1 // pred_check_branch
      %45 = sbr.rel (0) target = $region13
    $region12: #{tpu_custom_call.1} parent=1 // pred_region
      %s46 = sadd.s32 0, 0
      %s48 = ssub.s32 128, 128
      %49 = vsyncadd [#allocation6], %s48
      %s50 = smul.addr %s46, 128
      %s51 = scalar_lea.hbm %s2, %s50
      %s53 = sshll.u32 [#allocation7], 4
      %s54 = int_to_ptr.vmem [resolvable:$true] %s53
      %56 = dma.hbm_to_vmem [thread:$0]  %s51, 128, %s54, [#allocation6]
    $region13: #{tpu_custom_call.1} parent=1 // pred_fallthru
      _
    // Predicated region
    $region14: #{tpu_custom_call.1} parent=1 // pred_check
      _
    $region15: #{tpu_custom_call.1} parent=1 // pred_check_branch
      %58 = sbr.rel (0) target = $region17
    $region16: #{tpu_custom_call.1} parent=1 // pred_region
      %s59 = sadd.s32 0, 0
      %p60 = scmp.lt.s32.totalorder %s59, 0
      %s61 = scalar_select %p60, %s59, 0
      %s62 = smul.addr %s61, 8
      %s63 = scalar_lea.vmem %s3, %s62
      %s64 = sadd.s32 0, 0
    $region17: #{tpu_custom_call.1} parent=1 // pred_fallthru
      _
    // Predicated region
    $region18: #{tpu_custom_call.1} parent=1 // pred_check
      _
    $region19: #{tpu_custom_call.1} parent=1 // pred_check_branch
      %66 = sbr.rel (0) target = $region21
    $region20: #{tpu_custom_call.1} parent=1 // pred_region
      %s67 = sadd.s32 0, 0
      %s69 = ssub.s32 128, 128
      %70 = vsyncadd [#allocation9], %s69
      %s71 = smul.addr %s67, 128
      %s72 = scalar_lea.hbm %s4, %s71
      %s74 = sshll.u32 [#allocation8], 4
      %s75 = int_to_ptr.vmem [resolvable:$true] %s74
      %77 = dma.hbm_to_vmem [thread:$0]  %s72, 128, %s75, [#allocation9]
    $region21: #{tpu_custom_call.1} parent=1 // pred_fallthru
      _
    // Predicated region
    $region22: #{tpu_custom_call.1} parent=1 // pred_check
      _
    $region23: #{tpu_custom_call.1} parent=1 // pred_check_branch
      %79 = sbr.rel (0) target = $region25
    $region24: #{tpu_custom_call.1} parent=1 // pred_region
      %80 = dma.done [#allocation3], 128
    $region25: #{tpu_custom_call.1} parent=1 // pred_fallthru
      _
    // Predicated region
    $region26: #{tpu_custom_call.1} parent=1 // pred_check
      _
    $region27: #{tpu_custom_call.1} parent=1 // pred_check_branch
      %82 = sbr.rel (0) target = $region29
    $region28: #{tpu_custom_call.1} parent=1 // pred_region
      %83 = dma.done [#allocation6], 128
    $region29: #{tpu_custom_call.1} parent=1 // pred_fallthru
      _
    // Predicated region
    $region30: #{tpu_custom_call.1} parent=1 // pred_check
      _
    $region31: #{tpu_custom_call.1} parent=1 // pred_check_branch
      %85 = sbr.rel (0) target = $region33
    $region32: #{tpu_custom_call.1} parent=1 // pred_region
      %86 = dma.done [#allocation6], 128
    $region33: #{tpu_custom_call.1} parent=1 // pred_fallthru
      _
    // Predicated region
    $region34: #{tpu_custom_call.1} parent=1 // pred_check
      _
    $region35: #{tpu_custom_call.1} parent=1 // pred_check_branch
      %88 = sbr.rel (0) target = $region37
    $region36: #{tpu_custom_call.1} parent=1 // pred_region
      %89 = dma.done [#allocation9], 128
    $region37: #{tpu_custom_call.1} parent=1 // pred_fallthru
      _
    %s90 = sadd.s32 0, 0
    %p91 = scmp.lt.s32.totalorder %s90, 0
    %s92 = scalar_select %p91, %s90, 0
    %s93 = smul.addr %s92, 8
    %s94 = scalar_lea.vmem %s3, %s93
    %s95 = sadd.s32 0, 0
    %s96 = sadd.s32 0, 0
    %s97 = sadd.s32 0, 0
    %s98 = sadd.s32 0, 0
    %p99 = scmp.lt.s32.totalorder %s98, 0
    %s100 = scalar_select %p99, %s98, 0
    %s101 = smul.addr %s100, 8
    %s102 = scalar_lea.vmem %s3, %s101
    %s103 = sadd.s32 0, 0
    %s104 = sadd.s32 0, 0
    %p105 = scmp.eq.s32.totalorder 0, 0
    // Predicated region
    $region38: #{tpu_custom_call.1} parent=1 // pred_check
      %p106 = pneg %p105
    $region39: #{tpu_custom_call.1} parent=1 // pred_check_branch
      %108 = sbr.rel (%p106) target = $region41
    $region40: #{tpu_custom_call.1} parent=1 // pred_region
      %109 = vst [vmem:[#allocation10] sm:$0x1] 0.0
      %110 = vst [vmem:[#allocation11] sm:$0x1] 0.0
      %111 = vst [vmem:[#allocation13] sm:$0x1] 0.0
    $region41: #{tpu_custom_call.1} parent=1 // pred_fallthru
      _
    %v112 = vld [vmem:[#allocation2] sm:$0xff]
    %v113 = vld [vmem:[#allocation5] sm:$0xff]
    %v114 = vld [vmem:[#allocation7] sm:$0xff]
    %v115 = vsub.f32 1.0, %v112
    %v116 = vlog2.pop %v112
    %v117 = vmul.f32 %v116, 0.6931472
    %v118 = vmax.f32 %v117, -100.0
    %v119 = vlog2.pop %v115
    %v120 = vmul.f32 %v119, 0.6931472
    %v121 = vmax.f32 %v120, -100.0
    %v122 = vmul.f32 %v114, %v118
    %v123 = vsub.f32 1.0, %v114
    %v124 = vmul.f32 %v123, %v121
    %v125 = vadd.f32 %v122, %v124
    %v126 = vsub.f32 0.0, %v125
    %v127 = vlog2.pop %v113
    %v128 = vmul.f32 %v127, 0.6931472
    %v129 = vmax.f32 %v128, -100.0
    %v130 = vsub.f32 1.0, %v113
    %v131 = vlog2.pop %v130
    %v132 = vmul.f32 %v131, 0.6931472
    %v133 = vmax.f32 %v132, -100.0
    %v134 = vmul.f32 %v112, %v129
    %v135 = vmul.f32 %v115, %v133
    %v136 = vadd.f32 %v134, %v135
    %v137 = vsub.f32 0.0, %v136
    %v138 = vld [vmem:[#allocation10] sm:$0x1]
    %v139 = vrot.slane %v126, 4
    %v140 = vadd.f32 %v126, %v139
    %v141 = vrot.slane %v140, 2
    %v142 = vadd.f32 %v140, %v141
    %v143 = vrot.slane %v142, 1
    %v144 = vadd.f32 %v142, %v143
    %v145 = vadd.f32 %v138, %v144
    %146 = vst [vmem:[#allocation10] sm:$0x1] %v145
    %v147 = vld [vmem:[#allocation11] sm:$0x1]
    %v148 = vrot.slane %v137, 4
    %v149 = vadd.f32 %v137, %v148
    %v150 = vrot.slane %v149, 2
    %v151 = vadd.f32 %v149, %v150
    %v152 = vrot.slane %v151, 1
    %v153 = vadd.f32 %v151, %v152
    %v154 = vadd.f32 %v147, %v153
    %155 = vst [vmem:[#allocation11] sm:$0x1] %v154
    %v156 = vld [vmem:[%s102] sm:$0xff]
    %v157 = vld [vmem:[#allocation8] sm:$0xff]
    %v158 = vlog2.pop %v156
    %v159 = vmul.f32 %v158, 0.6931472
    %v160 = vmax.f32 %v159, -100.0
    %v161 = vsub.f32 1.0, %v156
    %v162 = vlog2.pop %v161
    %v163 = vmul.f32 %v162, 0.6931472
    %v164 = vmax.f32 %v163, -100.0
    %v165 = vmul.f32 %v157, %v160
    %v166 = vsub.f32 1.0, %v157
    %v167 = vmul.f32 %v166, %v164
    %v168 = vadd.f32 %v165, %v167
    %v169 = vsub.f32 0.0, %v168
    %v170 = vld [vmem:[#allocation13] sm:$0x1]
    %v171 = vrot.slane %v169, 4
    %v172 = vadd.f32 %v169, %v171
    %v173 = vrot.slane %v172, 2
    %v174 = vadd.f32 %v172, %v173
    %v175 = vrot.slane %v174, 1
    %v176 = vadd.f32 %v174, %v175
    %v177 = vadd.f32 %v170, %v176
    %178 = vst [vmem:[#allocation13] sm:$0x1] %v177
    // Predicated region
    $region42: #{tpu_custom_call.1} parent=1 // pred_check
      _
    $region43: #{tpu_custom_call.1} parent=1 // pred_check_branch
      %180 = sbr.rel (0) target = $region45
    $region44: #{tpu_custom_call.1} parent=1 // pred_region
      %s182 = ssub.s32 16, 16
      %183 = vsyncadd [#allocation4], %s182
      %s185 = sshll.u32 [#allocation10], 4
      %s186 = int_to_ptr.vmem [resolvable:$true] %s185
      %188 = dma.vmem_to_hbm [thread:$0]  %s186, 16, %s5, [#allocation4]
    $region45: #{tpu_custom_call.1} parent=1 // pred_fallthru
      _
    // Predicated region
    $region46: #{tpu_custom_call.1} parent=1 // pred_check
      _
    $region47: #{tpu_custom_call.1} parent=1 // pred_check_branch
      %190 = sbr.rel (0) target = $region49
    $region48: #{tpu_custom_call.1} parent=1 // pred_region
      %s192 = ssub.s32 16, 16
      %193 = vsyncadd [#allocation12], %s192
      %s195 = sshll.u32 [#allocation11], 4
      %s196 = int_to_ptr.vmem [resolvable:$true] %s195
      %198 = dma.vmem_to_hbm [thread:$0]  %s196, 16, %s6, [#allocation12]
    $region49: #{tpu_custom_call.1} parent=1 // pred_fallthru
      _
    // Predicated region
    $region50: #{tpu_custom_call.1} parent=1 // pred_check
      _
    $region51: #{tpu_custom_call.1} parent=1 // pred_check_branch
      %200 = sbr.rel (0) target = $region53
    $region52: #{tpu_custom_call.1} parent=1 // pred_region
      %s202 = ssub.s32 16, 16
      %203 = vsyncadd [#allocation12], %s202
      %s205 = sshll.u32 [#allocation13], 4
      %s206 = int_to_ptr.vmem [resolvable:$true] %s205
      %208 = dma.vmem_to_hbm [thread:$0]  %s206, 16, %s7, [#allocation12]
    $region53: #{tpu_custom_call.1} parent=1 // pred_fallthru
      _
    // Predicated region
    $region54: #{tpu_custom_call.1} parent=1 // pred_check
      _
    $region55: #{tpu_custom_call.1} parent=1 // pred_check_branch
      %210 = sbr.rel (0) target = $region57
    $region56: #{tpu_custom_call.1} parent=1 // pred_region
      %211 = dma.done [#allocation4], 16
    $region57: #{tpu_custom_call.1} parent=1 // pred_fallthru
      _
    // Predicated region
    $region58: #{tpu_custom_call.1} parent=1 // pred_check
      _
    $region59: #{tpu_custom_call.1} parent=1 // pred_check_branch
      %213 = sbr.rel (0) target = $region61
    $region60: #{tpu_custom_call.1} parent=1 // pred_region
      %214 = dma.done [#allocation12], 16
    $region61: #{tpu_custom_call.1} parent=1 // pred_fallthru
      _
    // Predicated region
    $region62: #{tpu_custom_call.1} parent=1 // pred_check
      _
    $region63: #{tpu_custom_call.1} parent=1 // pred_check_branch
      %216 = sbr.rel (0) target = $region65
    $region64: #{tpu_custom_call.1} parent=1 // pred_region
      %217 = dma.done [#allocation12], 16
    $region65: #{tpu_custom_call.1} parent=1 // pred_fallthru
      _
    %218 = vsyncpa [#allocation3], 1
    %219 = vsyncpa [#allocation6], 1
    %220 = vsyncpa [#allocation9], 1
    %221 = vsyncpa [#allocation4], 1
    %222 = vsyncpa [#allocation12], 1

</llo_original>
